<compile_context>
chip_gen: v6e
topology: v6e:2x2x1
jax: 0.10.0
libtpu: 0.0.40
codegen_flags: <defaults>
</compile_context>

<pallas_src>
import jax
import jax.numpy as jnp
from jax.experimental import pallas as pl
from jax.experimental.pallas import tpu as pltpu

_LANE = 128      # vreg lane width
_SUBLANE = 8     # f32 sublane count


def _round_up(x: int, m: int) -> int:
    return (x + m - 1) // m * m


def _vmem_tile_bytes(rows: int, cols: int, itemsize: int = 4) -> int:
    # Real VMEM footprint of an f32 tile: sublane-pad rows to 8, lane-pad cols to 128.
    return _round_up(max(rows, 1), _SUBLANE) * _round_up(max(cols, 1), _LANE) * itemsize


def mlp_kernel(x_ref, w1_ref, b1_ref, w2_ref, b2_ref, o_ref):
    # One (tm, in_features) batch tile per grid step; weights/biases stay
    # resident in VMEM (constant index_map).
    x = x_ref[...]
    h = jnp.dot(x, w1_ref[...], preferred_element_type=jnp.float32) + b1_ref[...]
    h = jnp.maximum(h, 0.0)                                   # ReLU on the VPU
    q = jnp.dot(h, w2_ref[...], preferred_element_type=jnp.float32) + b2_ref[...]
    o_ref[...] = q.astype(o_ref.dtype)                        # compact (tm, nb_action) store


def network_forward(state, w1, b1, w2, b2, *, tm=None):
    """state: (B, input_size) f32; w1: (input_size, 32); b1: (1, 32);
    w2: (32, nb_action); b2: (1, nb_action)  ->  (B, nb_action) f32.

    Weights are stored pre-transposed as (in_features, out_features), so the
    kernel computes y = x @ W + b (== PyTorch's x @ W.T + b).
    """
    B, in_features = state.shape
    hidden = w1.shape[1]
    nb_action = w2.shape[1]

    # --- batch tiling: large tile, but keep >= 2 grid steps when possible
    #     (v7x megacore shards the "parallel" batch axis across 2 TCs) -------
    if tm is None:
        tm = 2048
    tm = min(tm, _round_up(pl.cdiv(B, 2), _SUBLANE))
    tm = max(_SUBLANE, _round_up(tm, _SUBLANE))
    grid = (pl.cdiv(B, tm),)

    in_specs = [
        pl.BlockSpec((tm, in_features), lambda i: (i, 0)),      # state tile
        pl.BlockSpec((in_features, hidden), lambda i: (0, 0)),  # w1 (resident, full-extent)
        pl.BlockSpec((1, hidden), lambda i: (0, 0)),            # b1 (resident)
        pl.BlockSpec((hidden, nb_action), lambda i: (0, 0)),    # w2 (resident)
        pl.BlockSpec((1, nb_action), lambda i: (0, 0)),         # b2 (resident)
    ]
    out_specs = pl.BlockSpec((tm, nb_action), lambda i: (i, 0))  # compact output

    # --- scoped-VMEM budget from *padded* tile footprints, double-buffered --
    per_step_bytes = _vmem_tile_bytes(tm, in_features) + _vmem_tile_bytes(tm, nb_action)
    weight_bytes = (_vmem_tile_bytes(in_features, hidden)
                    + _vmem_tile_bytes(1, hidden)
                    + _vmem_tile_bytes(hidden, nb_action)
                    + _vmem_tile_bytes(1, nb_action))
    vmem_limit = 2 * per_step_bytes + 2 * weight_bytes + (2 << 20)
    vmem_limit = int(min(max(vmem_limit, 8 << 20), 32 << 20))   # safe on v7x (64 MiB phys)

    return pl.pallas_call(
        mlp_kernel,
        out_shape=jax.ShapeDtypeStruct((B, nb_action), jnp.float32),
        grid=grid,
        in_specs=in_specs,
        out_specs=out_specs,
        compiler_params=pltpu.CompilerParams(
            dimension_semantics=("parallel",),   # megacore-shard batch on v7x
            vmem_limit_bytes=vmem_limit,
        ),
    )(state, w1, b1, w2, b2)


def init_params(key, input_size, nb_action, hidden=32):
    # Deterministic init mimicking nn.Linear's uniform(-1/sqrt(fan_in), +1/sqrt(fan_in)).
    # Stored already transposed as (in, out) so the hot path has zero extra XLA ops.
    k1, k2, k3, k4 = jax.random.split(key, 4)
    bound1 = 1.0 / jnp.sqrt(jnp.float32(input_size))
    bound2 = 1.0 / jnp.sqrt(jnp.float32(hidden))
    w1 = jax.random.uniform(k1, (input_size, hidden), jnp.float32, -bound1, bound1)
    b1 = jax.random.uniform(k2, (1, hidden), jnp.float32, -bound1, bound1)
    w2 = jax.random.uniform(k3, (hidden, nb_action), jnp.float32, -bound2, bound2)
    b2 = jax.random.uniform(k4, (1, nb_action), jnp.float32, -bound2, bound2)
    return w1, b1, w2, b2


if __name__ == "__main__":
    key = jax.random.PRNGKey(0)
    k_params, k_state, k_big = jax.random.split(key, 3)

    batch = 2
    input_size = 8     # e.g. sensor vector size
    nb_action = 4

    w1, b1, w2, b2 = init_params(k_params, input_size, nb_action)
    state = jax.random.normal(k_state, (batch, input_size), jnp.float32)

    # Tiny-batch check (online action-selection path of the original module).
    q_values = jax.block_until_ready(network_forward(state, w1, b1, w2, b2))
    ref = jnp.maximum(state @ w1 + b1, 0.0) @ w2 + b2
    assert q_values.shape == (batch, nb_action)
    assert jnp.allclose(q_values, ref, atol=1e-5), "mismatch vs reference (small batch)"

    # Large, non-tile-aligned batch: exercises the multi-step, double-buffered,
    # ragged-last-block path (replay-buffer regime where the kernel pays off).
    big_batch = 1000
    big_state = jax.random.normal(k_big, (big_batch, input_size), jnp.float32)
    q_big = jax.block_until_ready(network_forward(big_state, w1, b1, w2, b2))
    ref_big = jnp.maximum(big_state @ w1 + b1, 0.0) @ w2 + b2
    assert q_big.shape == (big_batch, nb_action)
    assert jnp.allclose(q_big, ref_big, atol=1e-4), "mismatch vs reference (large batch)"

    print("KERNEL_OK")
</pallas_src>

<mosaic_0001>
module attributes {stable_mosaic.version = 11 : i64} {
  func.func @mlp_kernel(%arg0: i32, %arg1: memref<8x8xf32, #tpu.memory_space<vmem>>, %arg2: memref<8x32xf32, #tpu.memory_space<vmem>>, %arg3: memref<1x32xf32, #tpu.memory_space<vmem>>, %arg4: memref<32x4xf32, #tpu.memory_space<vmem>>, %arg5: memref<1x4xf32, #tpu.memory_space<vmem>>, %arg6: memref<8x4xf32, #tpu.memory_space<vmem>>) attributes {dimension_semantics = [#tpu.dimension_semantics<parallel>], iteration_bounds = array<i64: 1>, scalar_prefetch = 0 : i64, scratch_operands = 0 : i64, tpu.core_type = #tpu.core_type<tc>, window_params = [{transform_indices = @transform_0, window_bounds = array<i64: 8, 8>}, {pipeline_mode = #tpu.pipeline_mode<synchronous>, transform_indices = @transform_1, window_bounds = array<i64: 8, 32>}, {pipeline_mode = #tpu.pipeline_mode<synchronous>, transform_indices = @transform_2, window_bounds = array<i64: 1, 32>}, {pipeline_mode = #tpu.pipeline_mode<synchronous>, transform_indices = @transform_3, window_bounds = array<i64: 32, 4>}, {pipeline_mode = #tpu.pipeline_mode<synchronous>, transform_indices = @transform_4, window_bounds = array<i64: 1, 4>}, {transform_indices = @transform_5, window_bounds = array<i64: 8, 4>}]} {
    %c0 = arith.constant 0 : index
    %c0_0 = arith.constant 0 : index
    %0 = vector.load %arg1[%c0, %c0_0] : memref<8x8xf32, #tpu.memory_space<vmem>>, vector<8x8xf32>
    %c0_1 = arith.constant 0 : index
    %c0_2 = arith.constant 0 : index
    %1 = vector.load %arg2[%c0_1, %c0_2] : memref<8x32xf32, #tpu.memory_space<vmem>>, vector<8x32xf32>
    %cst = arith.constant dense<0.000000e+00> : vector<8x32xf32>
    %2 = tpu.matmul %0, %1, %cst {dimension_numbers = #tpu.dot_dimension_numbers<[1], [0], [0], [1], [0, 0, 1, 1], [], []>} : vector<8x8xf32>, vector<8x32xf32>, vector<8x32xf32> -> vector<8x32xf32>
    %c0_3 = arith.constant 0 : index
    %c0_4 = arith.constant 0 : index
    %3 = vector.load %arg3[%c0_3, %c0_4] : memref<1x32xf32, #tpu.memory_space<vmem>>, vector<1x32xf32>
    %4 = vector.broadcast %3 : vector<1x32xf32> to vector<8x32xf32>
    %5 = arith.addf %2, %4 : vector<8x32xf32>
    %cst_5 = arith.constant 0.000000e+00 : f32
    %6 = vector.broadcast %cst_5 : f32 to vector<8x32xf32>
    %7 = arith.maximumf %5, %6 : vector<8x32xf32>
    %c0_6 = arith.constant 0 : index
    %c0_7 = arith.constant 0 : index
    %8 = vector.load %arg4[%c0_6, %c0_7] : memref<32x4xf32, #tpu.memory_space<vmem>>, vector<32x4xf32>
    %cst_8 = arith.constant dense<0.000000e+00> : vector<8x4xf32>
    %9 = tpu.matmul %7, %8, %cst_8 {dimension_numbers = #tpu.dot_dimension_numbers<[1], [0], [0], [1], [0, 0, 1, 1], [], []>} : vector<8x32xf32>, vector<32x4xf32>, vector<8x4xf32> -> vector<8x4xf32>
    %c0_9 = arith.constant 0 : index
    %c0_10 = arith.constant 0 : index
    %10 = vector.load %arg5[%c0_9, %c0_10] : memref<1x4xf32, #tpu.memory_space<vmem>>, vector<1x4xf32>
    %11 = vector.broadcast %10 : vector<1x4xf32> to vector<8x4xf32>
    %12 = arith.addf %9, %11 : vector<8x4xf32>
    %c0_11 = arith.constant 0 : index
    %c0_12 = arith.constant 0 : index
    %13 = vector.load %arg6[%c0_11, %c0_12] : memref<8x4xf32, #tpu.memory_space<vmem>>, vector<8x4xf32>
    tpu.vector_store %arg6[%c0_11, %c0_12], %12 {strides = array<i32>} : memref<8x4xf32, #tpu.memory_space<vmem>>, vector<8x4xf32>,
    return
  }
  func.func @transform_0(%arg0: i32) -> (i32, i32) {
    %c0_i32 = arith.constant 0 : i32
    %c0_i32_0 = arith.constant 0 : i32
    return %arg0, %c0_i32 : i32, i32
  }
  func.func @transform_1(%arg0: i32) -> (i32, i32) {
    %c0_i32 = arith.constant 0 : i32
    %c0_i32_0 = arith.constant 0 : i32
    %c0_i32_1 = arith.constant 0 : i32
    return %c0_i32, %c0_i32_0 : i32, i32
  }
  func.func @transform_2(%arg0: i32) -> (i32, i32) {
    %c0_i32 = arith.constant 0 : i32
    %c0_i32_0 = arith.constant 0 : i32
    %c0_i32_1 = arith.constant 0 : i32
    return %c0_i32, %c0_i32_0 : i32, i32
  }
  func.func @transform_3(%arg0: i32) -> (i32, i32) {
    %c0_i32 = arith.constant 0 : i32
    %c0_i32_0 = arith.constant 0 : i32
    %c0_i32_1 = arith.constant 0 : i32
    return %c0_i32, %c0_i32_0 : i32, i32
  }
  func.func @transform_4(%arg0: i32) -> (i32, i32) {
    %c0_i32 = arith.constant 0 : i32
    %c0_i32_0 = arith.constant 0 : i32
    %c0_i32_1 = arith.constant 0 : i32
    return %c0_i32, %c0_i32_0 : i32, i32
  }
  func.func @transform_5(%arg0: i32) -> (i32, i32) {
    %c0_i32 = arith.constant 0 : i32
    %c0_i32_0 = arith.constant 0 : i32
    return %arg0, %c0_i32 : i32, i32
  }
}

</mosaic_0001>

<llo_original>
// kernel: tpu_custom_call.1
$region0: #{tpu_custom_call.1}
  #allocation0 [shape = 'u32[]', space=smem, size = 0x4, offset = 0x4, fixed_abs, tag = 'smem constant byte address 0x4 - core index']
  #allocation1 [shape = 'u32[144,128]{1,0:T(1,128)}', space=vmem, size = 0x12000, scoped, tag = 'internal scratch']
  %s0 = inlined_call_operand.vmem [shape: f32[2,8], index: 0, kind: input, shape index: {}]
  %s1 = inlined_call_operand.vmem [shape: f32[8,32], index: 1, kind: input, shape index: {}]
  %s2 = inlined_call_operand.vmem [shape: f32[1,32], index: 2, kind: input, shape index: {}]
  %s3 = inlined_call_operand.vmem [shape: f32[32,4], index: 3, kind: input, shape index: {}]
  %s4 = inlined_call_operand.vmem [shape: f32[1,4], index: 4, kind: input, shape index: {}]
  %s5 = inlined_call_operand.hbm [shape: f32[2,4], index: 5, kind: output, shape index: {}]
  %s6 = sld [smem:[#allocation0]]
  $region30: #{tpu_custom_call.1} parent=0
    _
  %s8 = ssub.s32 1, %s6
  %s9 = scalar_select 0, %s8, %s6
  $region1: #{tpu_custom_call.1} parent=0
    #allocation2 [shape = 'u8[4096]{0}', space=vmem, size = 0x1000, scoped, tag = 'output window, operand 0, single buffered']
    #allocation3 [shape = 's32[1]{0}', space=sflag, size = 0x4, scoped, tag = 'scoped memory for tpu_custom_call.1']
    %10 = vsyncpa [#allocation3], 0
    // Predicated region
    $region2: #{tpu_custom_call.1} parent=1 // pred_check
      _
    $region3: #{tpu_custom_call.1} parent=1 // pred_check_branch
      %12 = sbr.rel (0) target = $region5
    $region4: #{tpu_custom_call.1} parent=1 // pred_region
      _
    $region5: #{tpu_custom_call.1} parent=1 // pred_fallthru
      _
    // Predicated region
    $region6: #{tpu_custom_call.1} parent=1 // pred_check
      _
    $region7: #{tpu_custom_call.1} parent=1 // pred_check_branch
      %14 = sbr.rel (0) target = $region9
    $region8: #{tpu_custom_call.1} parent=1 // pred_region
      _
    $region9: #{tpu_custom_call.1} parent=1 // pred_fallthru
      _
    // Predicated region
    $region10: #{tpu_custom_call.1} parent=1 // pred_check
      _
    $region11: #{tpu_custom_call.1} parent=1 // pred_check_branch
      %16 = sbr.rel (0) target = $region13
    $region12: #{tpu_custom_call.1} parent=1 // pred_region
      _
    $region13: #{tpu_custom_call.1} parent=1 // pred_fallthru
      _
    // Predicated region
    $region14: #{tpu_custom_call.1} parent=1 // pred_check
      _
    $region15: #{tpu_custom_call.1} parent=1 // pred_check_branch
      %18 = sbr.rel (0) target = $region17
    $region16: #{tpu_custom_call.1} parent=1 // pred_region
      _
    $region17: #{tpu_custom_call.1} parent=1 // pred_fallthru
      _
    // Predicated region
    $region18: #{tpu_custom_call.1} parent=1 // pred_check
      _
    $region19: #{tpu_custom_call.1} parent=1 // pred_check_branch
      %20 = sbr.rel (0) target = $region21
    $region20: #{tpu_custom_call.1} parent=1 // pred_region
      _
    $region21: #{tpu_custom_call.1} parent=1 // pred_fallthru
      _
    %v21 = vld [vmem:[%s0] sm:$0xff]
    %v22 = vld [vmem:[%s1] sm:$0xff]
    %v23 = vld [vmem:[%s2] sm:$0x1]
    %v25 = vlaneseq
    %v26 = vshrl.u32 %v25, 7
    %v27 = vsub.s32 0, %v26
    %v28 = vrot.slane %v23, %v27
    %vm30 = vcmask 64512
    %v32 = vsel %vm30, %v21, 0
    %34 = vmatprep.subr.mxu0 0.0
    %35 = vmatpush1.msra.mxu0 0.0
    %36 = vmatprep.subr.mxu0 0.0
    %37 = vmatpush1.msra.mxu0 0.0
    %38 = vmatprep.subr.mxu0 0.0
    %39 = vmatpush1.msra.mxu0 0.0
    %40 = vmatprep.subr.mxu0 0.0
    %41 = vmatpush1.msra.mxu0 0.0
    %42 = vmatprep.subr.mxu0 0.0
    %43 = vmatpush1.msra.mxu0 0.0
    %44 = vmatprep.subr.mxu0 0.0
    %45 = vmatpush1.msra.mxu0 0.0
    %46 = vmatprep.subr.mxu0 0.0
    %47 = vmatpush1.msra.mxu0 0.0
    %48 = vmatprep.subr.mxu0 0.0
    %49 = vmatpush1.msra.mxu0 0.0
    %50 = vmatprep.subr.mxu0 0.0
    %51 = vmatpush1.msra.mxu0 0.0
    %52 = vmatprep.subr.mxu0 0.0
    %53 = vmatpush1.msra.mxu0 0.0
    %54 = vmatprep.subr.mxu0 0.0
    %55 = vmatpush1.msra.mxu0 0.0
    %56 = vmatprep.subr.mxu0 0.0
    %57 = vmatpush1.msra.mxu0 0.0
    %58 = vmatprep.subr.mxu0 0.0
    %59 = vmatpush1.msra.mxu0 0.0
    %60 = vmatprep.subr.mxu0 0.0
    %61 = vmatpush1.msra.mxu0 0.0
    %62 = vmatprep.subr.mxu0 0.0
    %63 = vmatpush1.msra.mxu0 0.0
    %64 = vmatprep.subr.mxu0 0.0
    %65 = vmatpush1.msra.mxu0 %v22
    %66 = vmatprep.subr.mxu0 0.0
    %67 = vmatpush2.msra.mxu0 0.0
    %68 = vmatprep.subr.mxu0 0.0
    %69 = vmatpush2.msra.mxu0 0.0
    %70 = vmatprep.subr.mxu0 0.0
    %71 = vmatpush2.msra.mxu0 0.0
    %72 = vmatprep.subr.mxu0 0.0
    %73 = vmatpush2.msra.mxu0 0.0
    %74 = vmatprep.subr.mxu0 0.0
    %75 = vmatpush2.msra.mxu0 0.0
    %76 = vmatprep.subr.mxu0 0.0
    %77 = vmatpush2.msra.mxu0 0.0
    %78 = vmatprep.subr.mxu0 0.0
    %79 = vmatpush2.msra.mxu0 0.0
    %80 = vmatprep.subr.mxu0 0.0
    %81 = vmatpush2.msra.mxu0 0.0
    %82 = vmatprep.subr.mxu0 0.0
    %83 = vmatpush2.msra.mxu0 0.0
    %84 = vmatprep.subr.mxu0 0.0
    %85 = vmatpush2.msra.mxu0 0.0
    %86 = vmatprep.subr.mxu0 0.0
    %87 = vmatpush2.msra.mxu0 0.0
    %88 = vmatprep.subr.mxu0 0.0
    %89 = vmatpush2.msra.mxu0 0.0
    %90 = vmatprep.subr.mxu0 0.0
    %91 = vmatpush2.msra.mxu0 0.0
    %92 = vmatprep.subr.mxu0 0.0
    %93 = vmatpush2.msra.mxu0 0.0
    %94 = vmatprep.subr.mxu0 0.0
    %95 = vmatpush2.msra.mxu0 0.0
    %96 = vmatprep.subr.mxu0 0.0
    %97 = vmatpush2.msra.mxu0 0.0
    %98 = vmatprep.mubr.f32.mxu0 0.0
    %99 = vmatmul.mubr.f32.gmra.mxu0 %v32
    %v100 = vpop.f32.mrf.mxu0
    %v101 = vadd.f32 %v28, %v100
    %v102 = vpop.f32.mrf.mxu0
    %103 = vdwg.mxu0
    %v104 = vmax.f32 %v101, 0.0
    %v105 = vld [vmem:[%s3] sm:$0xff]
    %v106 = vld [vmem:[%s3 + $0x8] sm:$0xff]
    %v107 = vld [vmem:[%s3 + $0x10] sm:$0xff]
    %v108 = vld [vmem:[%s3 + $0x18] sm:$0xff]
    %v109 = vld [vmem:[%s4] sm:$0x1]
    %v111 = vlaneseq
    %v112 = vshrl.u32 %v111, 7
    %v113 = vsub.s32 0, %v112
    %v114 = vrot.slane %v109, %v113
    %vm116 = vcmask 261120
    %v118 = vsel %vm116, %v104, 0
    %120 = vmatprep.subr.mxu0 0.0
    %121 = vmatpush1.msra.mxu0 0.0
    %122 = vmatprep.subr.mxu0 0.0
    %123 = vmatpush1.msra.mxu0 0.0
    %124 = vmatprep.subr.mxu0 0.0
    %125 = vmatpush1.msra.mxu0 0.0
    %126 = vmatprep.subr.mxu0 0.0
    %127 = vmatpush1.msra.mxu0 0.0
    %128 = vmatprep.subr.mxu0 0.0
    %129 = vmatpush1.msra.mxu0 0.0
    %130 = vmatprep.subr.mxu0 0.0
    %131 = vmatpush1.msra.mxu0 0.0
    %132 = vmatprep.subr.mxu0 0.0
    %133 = vmatpush1.msra.mxu0 0.0
    %134 = vmatprep.subr.mxu0 0.0
    %135 = vmatpush1.msra.mxu0 0.0
    %136 = vmatprep.subr.mxu0 0.0
    %137 = vmatpush1.msra.mxu0 0.0
    %138 = vmatprep.subr.mxu0 0.0
    %139 = vmatpush1.msra.mxu0 0.0
    %140 = vmatprep.subr.mxu0 0.0
    %141 = vmatpush1.msra.mxu0 0.0
    %142 = vmatprep.subr.mxu0 0.0
    %143 = vmatpush1.msra.mxu0 0.0
    %144 = vmatprep.subr.mxu0 0.0
    %145 = vmatpush1.msra.mxu0 %v108
    %146 = vmatprep.subr.mxu0 0.0
    %147 = vmatpush1.msra.mxu0 %v107
    %148 = vmatprep.subr.mxu0 0.0
    %149 = vmatpush1.msra.mxu0 %v106
    %150 = vmatprep.subr.mxu0 0.0
    %151 = vmatpush1.msra.mxu0 %v105
    %152 = vmatprep.subr.mxu0 0.0
    %153 = vmatpush2.msra.mxu0 0.0
    %154 = vmatprep.subr.mxu0 0.0
    %155 = vmatpush2.msra.mxu0 0.0
    %156 = vmatprep.subr.mxu0 0.0
    %157 = vmatpush2.msra.mxu0 0.0
    %158 = vmatprep.subr.mxu0 0.0
    %159 = vmatpush2.msra.mxu0 0.0
    %160 = vmatprep.subr.mxu0 0.0
    %161 = vmatpush2.msra.mxu0 0.0
    %162 = vmatprep.subr.mxu0 0.0
    %163 = vmatpush2.msra.mxu0 0.0
    %164 = vmatprep.subr.mxu0 0.0
    %165 = vmatpush2.msra.mxu0 0.0
    %166 = vmatprep.subr.mxu0 0.0
    %167 = vmatpush2.msra.mxu0 0.0
    %168 = vmatprep.subr.mxu0 0.0
    %169 = vmatpush2.msra.mxu0 0.0
    %170 = vmatprep.subr.mxu0 0.0
    %171 = vmatpush2.msra.mxu0 0.0
    %172 = vmatprep.subr.mxu0 0.0
    %173 = vmatpush2.msra.mxu0 0.0
    %174 = vmatprep.subr.mxu0 0.0
    %175 = vmatpush2.msra.mxu0 0.0
    %176 = vmatprep.subr.mxu0 0.0
    %177 = vmatpush2.msra.mxu0 0.0
    %178 = vmatprep.subr.mxu0 0.0
    %179 = vmatpush2.msra.mxu0 0.0
    %180 = vmatprep.subr.mxu0 0.0
    %181 = vmatpush2.msra.mxu0 0.0
    %182 = vmatprep.subr.mxu0 0.0
    %183 = vmatpush2.msra.mxu0 0.0
    %184 = vmatprep.mubr.f32.mxu0 0.0
    %185 = vmatmul.mubr.f32.gmra.mxu0 %v118
    %v186 = vpop.f32.mrf.mxu0
    %v187 = vadd.f32 %v114, %v186
    %v188 = vpop.f32.mrf.mxu0
    %189 = vdwg.mxu0
    %vm190 = vcmask 31744
    %191 = vst.msk [vmem:[#allocation2] sm:$0xff] %vm190, %v187
    // Predicated region
    $region22: #{tpu_custom_call.1} parent=1 // pred_check
      _
    $region23: #{tpu_custom_call.1} parent=1 // pred_check_branch
      %193 = sbr.rel (0) target = $region25
    $region24: #{tpu_custom_call.1} parent=1 // pred_region
      %s195 = ssub.s32 128, 32
      %196 = vsyncadd [#allocation3], %s195
      %s197 = sshll.u32 [#allocation2], 4
      %s198 = int_to_ptr.vmem [resolvable:$true] %s197
      %203 = dma.vmem_to_hbm [thread:$0]  %s198, 32, %s5, [#allocation3], 32, 32, 2
    $region25: #{tpu_custom_call.1} parent=1 // pred_fallthru
      _
    // Predicated region
    $region26: #{tpu_custom_call.1} parent=1 // pred_check
      _
    $region27: #{tpu_custom_call.1} parent=1 // pred_check_branch
      %205 = sbr.rel (0) target = $region29
    $region28: #{tpu_custom_call.1} parent=1 // pred_region
      %206 = dma.done [#allocation3], 128
    $region29: #{tpu_custom_call.1} parent=1 // pred_fallthru
      _
    %207 = vsyncpa [#allocation3], 1

</llo_original>
